<compile_context>
chip_gen: v5e
topology: v5e:2x2
jax: 0.10.0
libtpu: 0.0.40
codegen_flags: <defaults>
</compile_context>

<pallas_src>
import functools

import jax
import jax.numpy as jnp
from jax.experimental import pallas as pl
from jax.experimental.pallas import tpu as pltpu


def _round_up(x, m):
    return (x + m - 1) // m * m


def _actor_kernel(x_ref, w1_ref, b1_ref, w2_ref, b2_ref, wh_ref, bh_ref,
                  mean_ref, std_ref, *, max_action, a_pad):
    # fc1 + relu
    x = x_ref[...]
    h1 = jnp.dot(x, w1_ref[...], preferred_element_type=jnp.float32) + b1_ref[...]
    h1 = jnp.maximum(h1, 0.0)
    # fc2 + relu
    h2 = jnp.dot(h1, w2_ref[...], preferred_element_type=jnp.float32) + b2_ref[...]
    h2 = jnp.maximum(h2, 0.0)
    # fused heads: one (256, 2*a_pad) matmul, then split at the 128-lane boundary
    z = jnp.dot(h2, wh_ref[...], preferred_element_type=jnp.float32) + bh_ref[...]
    zm = z[:, :a_pad]          # mean pre-activation
    zs = z[:, a_pad:]          # log_std pre-activation
    mean_ref[...] = max_action * jnp.tanh(zm)
    std_ref[...] = jnp.exp(jnp.clip(zs, -20.0, 2.0))


def actor_net_forward(state, params, max_action):
    """state: (B, input_dim) f32.  params: dict of weights/biases.  Returns (mean, std)."""
    w1, b1 = params["w1"], params["b1"]
    w2, b2 = params["w2"], params["b2"]
    wm, bm = params["wm"], params["bm"]
    ws, bs = params["ws"], params["bs"]

    B, input_dim = state.shape
    hidden = w1.shape[1]
    action_dim = wm.shape[1]

    # ---- alignment / padding (all zero-padding => numerically a no-op) ----
    K_PAD = _round_up(input_dim, 128)          # 339 -> 384
    A_PAD = _round_up(action_dim, 128)         # 22  -> 128
    if B <= 256:
        TB = _round_up(max(B, 1), 8)           # single tile, sublane-aligned
    else:
        TB = 256                               # MXU-row-sized tiles for big batch
    B_PAD = _round_up(B, TB)
    n_b = B_PAD // TB

    f32 = jnp.float32
    x_p = jnp.zeros((B_PAD, K_PAD), f32).at[:B, :input_dim].set(state.astype(f32))
    w1_p = jnp.zeros((K_PAD, hidden), f32).at[:input_dim, :].set(w1)
    b1_p = b1.reshape(1, hidden).astype(f32)
    w2_p = w2.astype(f32)
    b2_p = b2.reshape(1, hidden).astype(f32)

    # Fused head weight/bias: [mean | log_std], each padded to A_PAD lanes.
    wh = jnp.zeros((hidden, 2 * A_PAD), f32)
    wh = wh.at[:, :action_dim].set(wm)
    wh = wh.at[:, A_PAD:A_PAD + action_dim].set(ws)
    bh = jnp.zeros((1, 2 * A_PAD), f32)
    bh = bh.at[0, :action_dim].set(bm)
    bh = bh.at[0, A_PAD:A_PAD + action_dim].set(bs)

    const = lambda shape: pl.BlockSpec(shape, lambda i: tuple(0 for _ in shape))

    kernel = functools.partial(_actor_kernel, max_action=float(max_action),
                               a_pad=A_PAD)

    mean_pad, std_pad = pl.pallas_call(
        kernel,
        out_shape=(
            jax.ShapeDtypeStruct((B_PAD, A_PAD), f32),
            jax.ShapeDtypeStruct((B_PAD, A_PAD), f32),
        ),
        grid=(n_b,),
        in_specs=[
            pl.BlockSpec((TB, K_PAD), lambda i: (i, 0)),     # state tile
            const((K_PAD, hidden)), const((1, hidden)),      # fc1
            const((hidden, hidden)), const((1, hidden)),     # fc2
            const((hidden, 2 * A_PAD)), const((1, 2 * A_PAD)),  # fused heads
        ],
        out_specs=(
            pl.BlockSpec((TB, A_PAD), lambda i: (i, 0)),
            pl.BlockSpec((TB, A_PAD), lambda i: (i, 0)),
        ),
        compiler_params=pltpu.CompilerParams(
            dimension_semantics=("parallel",)),
    )(x_p, w1_p, b1_p, w2_p, b2_p, wh, bh)

    # Strip batch / lane padding.
    mean = mean_pad[:B, :action_dim]
    std = std_pad[:B, :action_dim]
    return mean, std


def init_params(key, input_dim=339, hidden=256, action_dim=22):
    """Deterministic init mimicking nn.Linear's U(-1/sqrt(fan_in), 1/sqrt(fan_in))."""
    ks = jax.random.split(key, 8)

    def lin(kw, kb, fan_in, fan_out):
        bound = 1.0 / jnp.sqrt(jnp.float32(fan_in))
        w = jax.random.uniform(kw, (fan_in, fan_out), jnp.float32, -bound, bound)
        b = jax.random.uniform(kb, (fan_out,), jnp.float32, -bound, bound)
        return w, b

    w1, b1 = lin(ks[0], ks[1], input_dim, hidden)
    w2, b2 = lin(ks[2], ks[3], hidden, hidden)
    wm, bm = lin(ks[4], ks[5], hidden, action_dim)
    ws, bs = lin(ks[6], ks[7], hidden, action_dim)
    return dict(w1=w1, b1=b1, w2=w2, b2=b2, wm=wm, bm=bm, ws=ws, bs=bs)


def _reference(state, params, max_action):
    """Pure-JAX reference of the PyTorch forward for a sanity check."""
    h1 = jnp.maximum(state @ params["w1"] + params["b1"], 0.0)
    h2 = jnp.maximum(h1 @ params["w2"] + params["b2"], 0.0)
    mean = max_action * jnp.tanh(h2 @ params["wm"] + params["bm"])
    ls = jnp.clip(h2 @ params["ws"] + params["bs"], -20.0, 2.0)
    return mean, jnp.exp(ls)


if __name__ == "__main__":
    key = jax.random.PRNGKey(0)
    k_params, k_state = jax.random.split(key)

    input_dim, action_dim, hidden, batch = 339, 22, 256, 4
    max_action = 1.0

    params = init_params(k_params, input_dim=input_dim, hidden=hidden,
                         action_dim=action_dim)
    state = jax.random.normal(k_state, (batch, input_dim), jnp.float32)

    mean, std = actor_net_forward(state, params, max_action)
    jax.block_until_ready((mean, std))

    ref_mean, ref_std = _reference(state, params, max_action)
    assert mean.shape == (batch, action_dim) and std.shape == (batch, action_dim)
    assert jnp.allclose(mean, ref_mean, atol=1e-4, rtol=1e-4)
    assert jnp.allclose(std, ref_std, atol=1e-4, rtol=1e-4)

    print("KERNEL_OK")
</pallas_src>

<mosaic_0001>
module attributes {stable_mosaic.version = 11 : i64} {
  func.func @_actor_kernel(%arg0: i32, %arg1: memref<8x384xf32, #tpu.memory_space<vmem>>, %arg2: memref<384x256xf32, #tpu.memory_space<vmem>>, %arg3: memref<1x256xf32, #tpu.memory_space<vmem>>, %arg4: memref<256x256xf32, #tpu.memory_space<vmem>>, %arg5: memref<1x256xf32, #tpu.memory_space<vmem>>, %arg6: memref<256x256xf32, #tpu.memory_space<vmem>>, %arg7: memref<1x256xf32, #tpu.memory_space<vmem>>, %arg8: memref<8x128xf32, #tpu.memory_space<vmem>>, %arg9: memref<8x128xf32, #tpu.memory_space<vmem>>) attributes {dimension_semantics = [#tpu.dimension_semantics<parallel>], iteration_bounds = array<i64: 1>, scalar_prefetch = 0 : i64, scratch_operands = 0 : i64, tpu.core_type = #tpu.core_type<tc>, window_params = [{transform_indices = @transform_0, window_bounds = array<i64: 8, 384>}, {pipeline_mode = #tpu.pipeline_mode<synchronous>, transform_indices = @transform_1, window_bounds = array<i64: 384, 256>}, {pipeline_mode = #tpu.pipeline_mode<synchronous>, transform_indices = @transform_2, window_bounds = array<i64: 1, 256>}, {pipeline_mode = #tpu.pipeline_mode<synchronous>, transform_indices = @transform_3, window_bounds = array<i64: 256, 256>}, {pipeline_mode = #tpu.pipeline_mode<synchronous>, transform_indices = @transform_4, window_bounds = array<i64: 1, 256>}, {pipeline_mode = #tpu.pipeline_mode<synchronous>, transform_indices = @transform_5, window_bounds = array<i64: 256, 256>}, {pipeline_mode = #tpu.pipeline_mode<synchronous>, transform_indices = @transform_6, window_bounds = array<i64: 1, 256>}, {transform_indices = @transform_7, window_bounds = array<i64: 8, 128>}, {transform_indices = @transform_8, window_bounds = array<i64: 8, 128>}]} {
    %c0 = arith.constant 0 : index
    %c0_0 = arith.constant 0 : index
    %0 = vector.load %arg1[%c0, %c0_0] : memref<8x384xf32, #tpu.memory_space<vmem>>, vector<8x384xf32>
    %c0_1 = arith.constant 0 : index
    %c0_2 = arith.constant 0 : index
    %1 = vector.load %arg2[%c0_1, %c0_2] : memref<384x256xf32, #tpu.memory_space<vmem>>, vector<384x256xf32>
    %cst = arith.constant dense<0.000000e+00> : vector<8x256xf32>
    %2 = tpu.matmul %0, %1, %cst {dimension_numbers = #tpu.dot_dimension_numbers<[1], [0], [0], [1], [0, 0, 1, 1], [], []>} : vector<8x384xf32>, vector<384x256xf32>, vector<8x256xf32> -> vector<8x256xf32>
    %c0_3 = arith.constant 0 : index
    %c0_4 = arith.constant 0 : index
    %3 = vector.load %arg3[%c0_3, %c0_4] : memref<1x256xf32, #tpu.memory_space<vmem>>, vector<1x256xf32>
    %4 = vector.broadcast %3 : vector<1x256xf32> to vector<8x256xf32>
    %5 = arith.addf %2, %4 : vector<8x256xf32>
    %cst_5 = arith.constant 0.000000e+00 : f32
    %6 = vector.broadcast %cst_5 : f32 to vector<8x256xf32>
    %7 = arith.maximumf %5, %6 : vector<8x256xf32>
    %c0_6 = arith.constant 0 : index
    %c0_7 = arith.constant 0 : index
    %8 = vector.load %arg4[%c0_6, %c0_7] : memref<256x256xf32, #tpu.memory_space<vmem>>, vector<256x256xf32>
    %cst_8 = arith.constant dense<0.000000e+00> : vector<8x256xf32>
    %9 = tpu.matmul %7, %8, %cst_8 {dimension_numbers = #tpu.dot_dimension_numbers<[1], [0], [0], [1], [0, 0, 1, 1], [], []>} : vector<8x256xf32>, vector<256x256xf32>, vector<8x256xf32> -> vector<8x256xf32>
    %c0_9 = arith.constant 0 : index
    %c0_10 = arith.constant 0 : index
    %10 = vector.load %arg5[%c0_9, %c0_10] : memref<1x256xf32, #tpu.memory_space<vmem>>, vector<1x256xf32>
    %11 = vector.broadcast %10 : vector<1x256xf32> to vector<8x256xf32>
    %12 = arith.addf %9, %11 : vector<8x256xf32>
    %cst_11 = arith.constant 0.000000e+00 : f32
    %13 = vector.broadcast %cst_11 : f32 to vector<8x256xf32>
    %14 = arith.maximumf %12, %13 : vector<8x256xf32>
    %c0_12 = arith.constant 0 : index
    %c0_13 = arith.constant 0 : index
    %15 = vector.load %arg6[%c0_12, %c0_13] : memref<256x256xf32, #tpu.memory_space<vmem>>, vector<256x256xf32>
    %cst_14 = arith.constant dense<0.000000e+00> : vector<8x256xf32>
    %16 = tpu.matmul %14, %15, %cst_14 {dimension_numbers = #tpu.dot_dimension_numbers<[1], [0], [0], [1], [0, 0, 1, 1], [], []>} : vector<8x256xf32>, vector<256x256xf32>, vector<8x256xf32> -> vector<8x256xf32>
    %c0_15 = arith.constant 0 : index
    %c0_16 = arith.constant 0 : index
    %17 = vector.load %arg7[%c0_15, %c0_16] : memref<1x256xf32, #tpu.memory_space<vmem>>, vector<1x256xf32>
    %18 = vector.broadcast %17 : vector<1x256xf32> to vector<8x256xf32>
    %19 = arith.addf %16, %18 : vector<8x256xf32>
    %20 = vector.extract_strided_slice %19 {offsets = [0, 0], sizes = [8, 128], strides = [1, 1]} : vector<8x256xf32> to vector<8x128xf32>
    %21 = vector.extract_strided_slice %19 {offsets = [0, 128], sizes = [8, 128], strides = [1, 1]} : vector<8x256xf32> to vector<8x128xf32>
    %22 = math.tanh %20 : vector<8x128xf32>
    %cst_17 = arith.constant 1.000000e+00 : f32
    %23 = vector.broadcast %cst_17 : f32 to vector<8x128xf32>
    %24 = arith.mulf %23, %22 : vector<8x128xf32>
    %c0_18 = arith.constant 0 : index
    %c0_19 = arith.constant 0 : index
    %25 = vector.load %arg8[%c0_18, %c0_19] : memref<8x128xf32, #tpu.memory_space<vmem>>, vector<8x128xf32>
    tpu.vector_store %arg8[%c0_18, %c0_19], %24 {strides = array<i32>} : memref<8x128xf32, #tpu.memory_space<vmem>>, vector<8x128xf32>,
    %cst_20 = arith.constant -2.000000e+01 : f32
    %cst_21 = arith.constant 2.000000e+00 : f32
    %26 = vector.broadcast %cst_20 : f32 to vector<8x128xf32>
    %27 = arith.maximumf %26, %21 : vector<8x128xf32>
    %28 = vector.broadcast %cst_21 : f32 to vector<8x128xf32>
    %29 = arith.minimumf %28, %27 : vector<8x128xf32>
    %30 = math.exp %29 : vector<8x128xf32>
    %c0_22 = arith.constant 0 : index
    %c0_23 = arith.constant 0 : index
    %31 = vector.load %arg9[%c0_22, %c0_23] : memref<8x128xf32, #tpu.memory_space<vmem>>, vector<8x128xf32>
    tpu.vector_store %arg9[%c0_22, %c0_23], %30 {strides = array<i32>} : memref<8x128xf32, #tpu.memory_space<vmem>>, vector<8x128xf32>,
    return
  }
  func.func @transform_0(%arg0: i32) -> (i32, i32) {
    %c0_i32 = arith.constant 0 : i32
    %c0_i32_0 = arith.constant 0 : i32
    return %arg0, %c0_i32 : i32, i32
  }
  func.func @transform_1(%arg0: i32) -> (i32, i32) {
    %c0_i32 = arith.constant 0 : i32
    %c0_i32_0 = arith.constant 0 : i32
    %c0_i32_1 = arith.constant 0 : i32
    return %c0_i32, %c0_i32_0 : i32, i32
  }
  func.func @transform_2(%arg0: i32) -> (i32, i32) {
    %c0_i32 = arith.constant 0 : i32
    %c0_i32_0 = arith.constant 0 : i32
    %c0_i32_1 = arith.constant 0 : i32
    return %c0_i32, %c0_i32_0 : i32, i32
  }
  func.func @transform_3(%arg0: i32) -> (i32, i32) {
    %c0_i32 = arith.constant 0 : i32
    %c0_i32_0 = arith.constant 0 : i32
    %c0_i32_1 = arith.constant 0 : i32
    return %c0_i32, %c0_i32_0 : i32, i32
  }
  func.func @transform_4(%arg0: i32) -> (i32, i32) {
    %c0_i32 = arith.constant 0 : i32
    %c0_i32_0 = arith.constant 0 : i32
    %c0_i32_1 = arith.constant 0 : i32
    return %c0_i32, %c0_i32_0 : i32, i32
  }
  func.func @transform_5(%arg0: i32) -> (i32, i32) {
    %c0_i32 = arith.constant 0 : i32
    %c0_i32_0 = arith.constant 0 : i32
    %c0_i32_1 = arith.constant 0 : i32
    return %c0_i32, %c0_i32_0 : i32, i32
  }
  func.func @transform_6(%arg0: i32) -> (i32, i32) {
    %c0_i32 = arith.constant 0 : i32
    %c0_i32_0 = arith.constant 0 : i32
    %c0_i32_1 = arith.constant 0 : i32
    return %c0_i32, %c0_i32_0 : i32, i32
  }
  func.func @transform_7(%arg0: i32) -> (i32, i32) {
    %c0_i32 = arith.constant 0 : i32
    %c0_i32_0 = arith.constant 0 : i32
    return %arg0, %c0_i32 : i32, i32
  }
  func.func @transform_8(%arg0: i32) -> (i32, i32) {
    %c0_i32 = arith.constant 0 : i32
    %c0_i32_0 = arith.constant 0 : i32
    return %arg0, %c0_i32 : i32, i32
  }
}

</mosaic_0001>

<llo_original>
// kernel: tpu_custom_call.1
$region0: #{tpu_custom_call.1}
  #allocation0 [shape = 'u32[]', space=smem, size = 0x4, offset = 0x4, fixed_abs, tag = 'smem constant byte address 0x4 - core index']
  #allocation1 [shape = 'u32[72,128]{1,0:T(1,128)}', space=vmem, size = 0x9000, scoped, tag = 'internal scratch']
  %s0 = inlined_call_operand.hbm [shape: f32[8,384], index: 0, kind: input, shape index: {}]
  %s1 = inlined_call_operand.hbm [shape: f32[384,256], index: 1, kind: input, shape index: {}]
  %s2 = inlined_call_operand.hbm [shape: f32[1,256], index: 2, kind: input, shape index: {}]
  %s3 = inlined_call_operand.hbm [shape: f32[256,256], index: 3, kind: input, shape index: {}]
  %s4 = inlined_call_operand.vmem [shape: f32[1,256], index: 4, kind: input, shape index: {}]
  %s5 = inlined_call_operand.hbm [shape: f32[256,256], index: 5, kind: input, shape index: {}]
  %s6 = inlined_call_operand.vmem [shape: f32[1,256], index: 6, kind: input, shape index: {}]
  %s7 = inlined_call_operand.hbm [shape: f32[8,128], index: 7, kind: output, shape index: {0}]
  %s8 = inlined_call_operand.hbm [shape: f32[8,128], index: 8, kind: output, shape index: {1}]
  %9 = xla_tuple %s7, %s8
  %s10 = sld [smem:[#allocation0]]
  $region66: #{tpu_custom_call.1} parent=0
    _
  %s12 = ssub.s32 1, %s10
  %s13 = scalar_select 0, %s12, %s10
  $region1: #{tpu_custom_call.1} parent=0
    #allocation2 [shape = 'u8[12288]{0}', space=vmem, size = 0x3000, scoped, tag = 'input window, operand 0, single buffered']
    #allocation3 [shape = 's32[1]{0}', space=sflag, size = 0x4, scoped, tag = 'scoped memory for tpu_custom_call.1']
    #allocation4 [shape = 's32[1]{0}', space=sflag, size = 0x4, scoped, tag = 'scoped memory for tpu_custom_call.1']
    #allocation5 [shape = 'u8[393216]{0}', space=vmem, size = 0x60000, scoped, tag = 'input window, operand 1, single buffered']
    #allocation6 [shape = 's32[1]{0}', space=sflag, size = 0x4, scoped, tag = 'scoped memory for tpu_custom_call.1']
    #allocation7 [shape = 'u8[1024]{0}', space=vmem, size = 0x400, scoped, tag = 'input window, operand 2, single buffered']
    #allocation8 [shape = 'u8[262144]{0}', space=vmem, size = 0x40000, scoped, tag = 'input window, operand 3, single buffered']
    #allocation9 [shape = 's32[1]{0}', space=sflag, size = 0x4, scoped, tag = 'scoped memory for tpu_custom_call.1']
    #allocation10 [shape = 'u8[262144]{0}', space=vmem, size = 0x40000, scoped, tag = 'input window, operand 5, single buffered']
    #allocation11 [shape = 'u8[4096]{0}', space=vmem, size = 0x1000, scoped, tag = 'output window, operand 0, single buffered']
    #allocation12 [shape = 'u8[4096]{0}', space=vmem, size = 0x1000, scoped, tag = 'output window, operand 1, single buffered']
    #allocation13 [shape = 's32[1]{0}', space=sflag, size = 0x4, scoped, tag = 'scoped memory for tpu_custom_call.1']
    %14 = vsyncpa [#allocation3], 0
    %15 = vsyncpa [#allocation6], 0
    %16 = vsyncpa [#allocation9], 0
    %17 = vsyncpa [#allocation4], 0
    %18 = vsyncpa [#allocation13], 0
    // Predicated region
    $region2: #{tpu_custom_call.1} parent=1 // pred_check
      _
    $region3: #{tpu_custom_call.1} parent=1 // pred_check_branch
      %20 = sbr.rel (0) target = $region5
    $region4: #{tpu_custom_call.1} parent=1 // pred_region
      %22 = vsyncadd [#allocation3], 0
      %s24 = sshll.u32 %s0, 4
      %s25 = int_to_ptr.hbm [resolvable:$true] %s24
      %s26 = sshll.u32 [#allocation2], 4
      %s27 = int_to_ptr.vmem [resolvable:$true] %s26
      %29 = dma.hbm_to_vmem [thread:$0]  %s25, 384, %s27, [#allocation3]
    $region5: #{tpu_custom_call.1} parent=1 // pred_fallthru
      _
    // Predicated region
    $region6: #{tpu_custom_call.1} parent=1 // pred_check
      _
    $region7: #{tpu_custom_call.1} parent=1 // pred_check_branch
      %31 = sbr.rel (0) target = $region9
    $region8: #{tpu_custom_call.1} parent=1 // pred_region
      %33 = vsyncadd [#allocation6], 0
      %s34 = sshll.u32 %s1, 4
      %s35 = int_to_ptr.hbm [resolvable:$true] %s34
      %s36 = sshll.u32 [#allocation5], 4
      %s37 = int_to_ptr.vmem [resolvable:$true] %s36
      %42 = dma.hbm_to_vmem [thread:$0]  %s35, 12288, %s37, [#allocation6], 256, 256, 16
    $region9: #{tpu_custom_call.1} parent=1 // pred_fallthru
      _
    // Predicated region
    $region10: #{tpu_custom_call.1} parent=1 // pred_check
      _
    $region11: #{tpu_custom_call.1} parent=1 // pred_check_branch
      %44 = sbr.rel (0) target = $region13
    $region12: #{tpu_custom_call.1} parent=1 // pred_region
      %46 = vsyncadd [#allocation6], 0
      %s48 = sshll.u32 %s2, 4
      %s49 = int_to_ptr.hbm [resolvable:$true] %s48
      %s50 = sshll.u32 [#allocation7], 4
      %s51 = int_to_ptr.vmem [resolvable:$true] %s50
      %53 = dma.hbm_to_vmem [thread:$0]  %s49, 32, %s51, [#allocation6]
    $region13: #{tpu_custom_call.1} parent=1 // pred_fallthru
      _
    // Predicated region
    $region14: #{tpu_custom_call.1} parent=1 // pred_check
      _
    $region15: #{tpu_custom_call.1} parent=1 // pred_check_branch
      %55 = sbr.rel (0) target = $region17
    $region16: #{tpu_custom_call.1} parent=1 // pred_region
      %57 = vsyncadd [#allocation9], 0
      %s58 = sshll.u32 %s3, 4
      %s59 = int_to_ptr.hbm [resolvable:$true] %s58
      %s60 = sshll.u32 [#allocation8], 4
      %s61 = int_to_ptr.vmem [resolvable:$true] %s60
      %66 = dma.hbm_to_vmem [thread:$0]  %s59, 8192, %s61, [#allocation9], 256, 256, 16
    $region17: #{tpu_custom_call.1} parent=1 // pred_fallthru
      _
    // Predicated region
    $region18: #{tpu_custom_call.1} parent=1 // pred_check
      _
    $region19: #{tpu_custom_call.1} parent=1 // pred_check_branch
      %68 = sbr.rel (0) target = $region21
    $region20: #{tpu_custom_call.1} parent=1 // pred_region
      _
    $region21: #{tpu_custom_call.1} parent=1 // pred_fallthru
      _
    // Predicated region
    $region22: #{tpu_custom_call.1} parent=1 // pred_check
      _
    $region23: #{tpu_custom_call.1} parent=1 // pred_check_branch
      %70 = sbr.rel (0) target = $region25
    $region24: #{tpu_custom_call.1} parent=1 // pred_region
      %72 = vsyncadd [#allocation9], 0
      %s73 = sshll.u32 %s5, 4
      %s74 = int_to_ptr.hbm [resolvable:$true] %s73
      %s75 = sshll.u32 [#allocation10], 4
      %s76 = int_to_ptr.vmem [resolvable:$true] %s75
      %81 = dma.hbm_to_vmem [thread:$0]  %s74, 8192, %s76, [#allocation9], 256, 256, 16
    $region25: #{tpu_custom_call.1} parent=1 // pred_fallthru
      _
    // Predicated region
    $region26: #{tpu_custom_call.1} parent=1 // pred_check
      _
    $region27: #{tpu_custom_call.1} parent=1 // pred_check_branch
      %83 = sbr.rel (0) target = $region29
    $region28: #{tpu_custom_call.1} parent=1 // pred_region
      _
    $region29: #{tpu_custom_call.1} parent=1 // pred_fallthru
      _
    // Predicated region
    $region30: #{tpu_custom_call.1} parent=1 // pred_check
      _
    $region31: #{tpu_custom_call.1} parent=1 // pred_check_branch
      %85 = sbr.rel (0) target = $region33
    $region32: #{tpu_custom_call.1} parent=1 // pred_region
      %87 = dma.done [#allocation3], 384
    $region33: #{tpu_custom_call.1} parent=1 // pred_fallthru
      _
    // Predicated region
    $region34: #{tpu_custom_call.1} parent=1 // pred_check
      _
    $region35: #{tpu_custom_call.1} parent=1 // pred_check_branch
      %89 = sbr.rel (0) target = $region37
    $region36: #{tpu_custom_call.1} parent=1 // pred_region
      %91 = dma.done [#allocation6], 12288
    $region37: #{tpu_custom_call.1} parent=1 // pred_fallthru
      _
    // Predicated region
    $region38: #{tpu_custom_call.1} parent=1 // pred_check
      _
    $region39: #{tpu_custom_call.1} parent=1 // pred_check_branch
      %93 = sbr.rel (0) target = $region41
    $region40: #{tpu_custom_call.1} parent=1 // pred_region
      %95 = dma.done [#allocation6], 32
    $region41: #{tpu_custom_call.1} parent=1 // pred_fallthru
      _
    // Predicated region
    $region42: #{tpu_custom_call.1} parent=1 // pred_check
      _
    $region43: #{tpu_custom_call.1} parent=1 // pred_check_branch
      %97 = sbr.rel (0) target = $region45
    $region44: #{tpu_custom_call.1} parent=1 // pred_region
      %99 = dma.done [#allocation9], 8192
    $region45: #{tpu_custom_call.1} parent=1 // pred_fallthru
      _
    // Predicated region
    $region46: #{tpu_custom_call.1} parent=1 // pred_check
      _
    $region47: #{tpu_custom_call.1} parent=1 // pred_check_branch
      %101 = sbr.rel (0) target = $region49
    $region48: #{tpu_custom_call.1} parent=1 // pred_region
      %103 = dma.done [#allocation9], 8192
    $region49: #{tpu_custom_call.1} parent=1 // pred_fallthru
      _
    %v104 = vld [vmem:[#allocation2] sm:$0xff]
    %v105 = vld [vmem:[#allocation2 + $0x8] sm:$0xff]
    %v106 = vld [vmem:[#allocation2 + $0x10] sm:$0xff]
    %v107 = vld [vmem:[#allocation5] sm:$0xff]
    %v108 = vld [vmem:[#allocation5 + $0x8] sm:$0xff]
    %v109 = vld [vmem:[#allocation5 + $0x10] sm:$0xff]
    %v110 = vld [vmem:[#allocation5 + $0x18] sm:$0xff]
    %v111 = vld [vmem:[#allocation5 + $0x20] sm:$0xff]
    %v112 = vld [vmem:[#allocation5 + $0x28] sm:$0xff]
    %v113 = vld [vmem:[#allocation5 + $0x30] sm:$0xff]
    %v114 = vld [vmem:[#allocation5 + $0x38] sm:$0xff]
    %v115 = vld [vmem:[#allocation5 + $0x40] sm:$0xff]
    %v116 = vld [vmem:[#allocation5 + $0x48] sm:$0xff]
    %v117 = vld [vmem:[#allocation5 + $0x50] sm:$0xff]
    %v118 = vld [vmem:[#allocation5 + $0x58] sm:$0xff]
    %v119 = vld [vmem:[#allocation5 + $0x60] sm:$0xff]
    %v120 = vld [vmem:[#allocation5 + $0x68] sm:$0xff]
    %v121 = vld [vmem:[#allocation5 + $0x70] sm:$0xff]
    %v122 = vld [vmem:[#allocation5 + $0x78] sm:$0xff]
    %v123 = vld [vmem:[#allocation5 + $0x80] sm:$0xff]
    %v124 = vld [vmem:[#allocation5 + $0x88] sm:$0xff]
    %v125 = vld [vmem:[#allocation5 + $0x90] sm:$0xff]
    %v126 = vld [vmem:[#allocation5 + $0x98] sm:$0xff]
    %v127 = vld [vmem:[#allocation5 + $0xa0] sm:$0xff]
    %v128 = vld [vmem:[#allocation5 + $0xa8] sm:$0xff]
    %v129 = vld [vmem:[#allocation5 + $0xb0] sm:$0xff]
    %v130 = vld [vmem:[#allocation5 + $0xb8] sm:$0xff]
    %v131 = vld [vmem:[#allocation5 + $0xc0] sm:$0xff]
    %v132 = vld [vmem:[#allocation5 + $0xc8] sm:$0xff]
    %v133 = vld [vmem:[#allocation5 + $0xd0] sm:$0xff]
    %v134 = vld [vmem:[#allocation5 + $0xd8] sm:$0xff]
    %v135 = vld [vmem:[#allocation5 + $0xe0] sm:$0xff]
    %v136 = vld [vmem:[#allocation5 + $0xe8] sm:$0xff]
    %v137 = vld [vmem:[#allocation5 + $0xf0] sm:$0xff]
    %v138 = vld [vmem:[#allocation5 + $0xf8] sm:$0xff]
    %v139 = vld [vmem:[#allocation5 + $0x100] sm:$0xff]
    %v140 = vld [vmem:[#allocation5 + $0x108] sm:$0xff]
    %v141 = vld [vmem:[#allocation5 + $0x110] sm:$0xff]
    %v142 = vld [vmem:[#allocation5 + $0x118] sm:$0xff]
    %v143 = vld [vmem:[#allocation5 + $0x120] sm:$0xff]
    %v144 = vld [vmem:[#allocation5 + $0x128] sm:$0xff]
    %v145 = vld [vmem:[#allocation5 + $0x130] sm:$0xff]
    %v146 = vld [vmem:[#allocation5 + $0x138] sm:$0xff]
    %v147 = vld [vmem:[#allocation5 + $0x140] sm:$0xff]
    %v148 = vld [vmem:[#allocation5 + $0x148] sm:$0xff]
    %v149 = vld [vmem:[#allocation5 + $0x150] sm:$0xff]
    %v150 = vld [vmem:[#allocation5 + $0x158] sm:$0xff]
    %v151 = vld [vmem:[#allocation5 + $0x160] sm:$0xff]
    %v152 = vld [vmem:[#allocation5 + $0x168] sm:$0xff]
    %v153 = vld [vmem:[#allocation5 + $0x170] sm:$0xff]
    %v154 = vld [vmem:[#allocation5 + $0x178] sm:$0xff]
    %v155 = vld [vmem:[#allocation5 + $0x180] sm:$0xff]
    %v156 = vld [vmem:[#allocation5 + $0x188] sm:$0xff]
    %v157 = vld [vmem:[#allocation5 + $0x190] sm:$0xff]
    %v158 = vld [vmem:[#allocation5 + $0x198] sm:$0xff]
    %v159 = vld [vmem:[#allocation5 + $0x1a0] sm:$0xff]
    %v160 = vld [vmem:[#allocation5 + $0x1a8] sm:$0xff]
    %v161 = vld [vmem:[#allocation5 + $0x1b0] sm:$0xff]
    %v162 = vld [vmem:[#allocation5 + $0x1b8] sm:$0xff]
    %v163 = vld [vmem:[#allocation5 + $0x1c0] sm:$0xff]
    %v164 = vld [vmem:[#allocation5 + $0x1c8] sm:$0xff]
    %v165 = vld [vmem:[#allocation5 + $0x1d0] sm:$0xff]
    %v166 = vld [vmem:[#allocation5 + $0x1d8] sm:$0xff]
    %v167 = vld [vmem:[#allocation5 + $0x1e0] sm:$0xff]
    %v168 = vld [vmem:[#allocation5 + $0x1e8] sm:$0xff]
    %v169 = vld [vmem:[#allocation5 + $0x1f0] sm:$0xff]
    %v170 = vld [vmem:[#allocation5 + $0x1f8] sm:$0xff]
    %v171 = vld [vmem:[#allocation5 + $0x200] sm:$0xff]
    %v172 = vld [vmem:[#allocation5 + $0x208] sm:$0xff]
    %v173 = vld [vmem:[#allocation5 + $0x210] sm:$0xff]
    %v174 = vld [vmem:[#allocation5 + $0x218] sm:$0xff]
    %v175 = vld [vmem:[#allocation5 + $0x220] sm:$0xff]
    %v176 = vld [vmem:[#allocation5 + $0x228] sm:$0xff]
    %v177 = vld [vmem:[#allocation5 + $0x230] sm:$0xff]
    %v178 = vld [vmem:[#allocation5 + $0x238] sm:$0xff]
    %v179 = vld [vmem:[#allocation5 + $0x240] sm:$0xff]
    %v180 = vld [vmem:[#allocation5 + $0x248] sm:$0xff]
    %v181 = vld [vmem:[#allocation5 + $0x250] sm:$0xff]
    %v182 = vld [vmem:[#allocation5 + $0x258] sm:$0xff]
    %v183 = vld [vmem:[#allocation5 + $0x260] sm:$0xff]
    %v184 = vld [vmem:[#allocation5 + $0x268] sm:$0xff]
    %v185 = vld [vmem:[#allocation5 + $0x270] sm:$0xff]
    %v186 = vld [vmem:[#allocation5 + $0x278] sm:$0xff]
    %v187 = vld [vmem:[#allocation5 + $0x280] sm:$0xff]
    %v188 = vld [vmem:[#allocation5 + $0x288] sm:$0xff]
    %v189 = vld [vmem:[#allocation5 + $0x290] sm:$0xff]
    %v190 = vld [vmem:[#allocation5 + $0x298] sm:$0xff]
    %v191 = vld [vmem:[#allocation5 + $0x2a0] sm:$0xff]
    %v192 = vld [vmem:[#allocation5 + $0x2a8] sm:$0xff]
    %v193 = vld [vmem:[#allocation5 + $0x2b0] sm:$0xff]
    %v194 = vld [vmem:[#allocation5 + $0x2b8] sm:$0xff]
    %v195 = vld [vmem:[#allocation5 + $0x2c0] sm:$0xff]
    %v196 = vld [vmem:[#allocation5 + $0x2c8] sm:$0xff]
    %v197 = vld [vmem:[#allocation5 + $0x2d0] sm:$0xff]
    %v198 = vld [vmem:[#allocation5 + $0x2d8] sm:$0xff]
    %v199 = vld [vmem:[#allocation5 + $0x2e0] sm:$0xff]
    %v200 = vld [vmem:[#allocation5 + $0x2e8] sm:$0xff]
    %v201 = vld [vmem:[#allocation5 + $0x2f0] sm:$0xff]
    %v202 = vld [vmem:[#allocation5 + $0x2f8] sm:$0xff]
    %v203 = vld [vmem:[#allocation7] sm:$0x3]
    %v205 = vperm.slane %v203, 0
    %v206 = vperm.slane %v203, 1
    %209 = vmatpush.msra.mxu0 %v137
    %210 = vmatpush.msra.mxu0 %v135
    %211 = vmatpush.msra.mxu0 %v133
    %212 = vmatpush.msra.mxu0 %v131
    %213 = vmatpush.msra.mxu0 %v129
    %214 = vmatpush.msra.mxu0 %v127
    %215 = vmatpush.msra.mxu0 %v125
    %216 = vmatpush.msra.mxu0 %v123
    %217 = vmatpush.msra.mxu0 %v121
    %218 = vmatpush.msra.mxu0 %v119
    %219 = vmatpush.msra.mxu0 %v117
    %220 = vmatpush.msra.mxu0 %v115
    %221 = vmatpush.msra.mxu0 %v113
    %222 = vmatpush.msra.mxu0 %v111
    %223 = vmatpush.msra.mxu0 %v109
    %224 = vmatpush.msra.mxu0 %v107
    %225 = vmatmul.f32.gmra.mxu0 %v104
    %v226 = vpop.f32.mrf.mxu0
    %v227 = vadd.f32 %v205, %v226
    %228 = vdwg.mxu0
    %229 = vmatpush.msra.mxu0 %v169
    %230 = vmatpush.msra.mxu0 %v167
    %231 = vmatpush.msra.mxu0 %v165
    %232 = vmatpush.msra.mxu0 %v163
    %233 = vmatpush.msra.mxu0 %v161
    %234 = vmatpush.msra.mxu0 %v159
    %235 = vmatpush.msra.mxu0 %v157
    %236 = vmatpush.msra.mxu0 %v155
    %237 = vmatpush.msra.mxu0 %v153
    %238 = vmatpush.msra.mxu0 %v151
    %239 = vmatpush.msra.mxu0 %v149
    %240 = vmatpush.msra.mxu0 %v147
    %241 = vmatpush.msra.mxu0 %v145
    %242 = vmatpush.msra.mxu0 %v143
    %243 = vmatpush.msra.mxu0 %v141
    %244 = vmatpush.msra.mxu0 %v139
    %245 = vmatmul.f32.gmra.mxu0 %v105
    %v246 = vpop.f32.mrf.mxu0
    %v247 = vadd.f32 %v227, %v246
    %248 = vdwg.mxu0
    %249 = vmatpush.msra.mxu0 %v201
    %250 = vmatpush.msra.mxu0 %v199
    %251 = vmatpush.msra.mxu0 %v197
    %252 = vmatpush.msra.mxu0 %v195
    %253 = vmatpush.msra.mxu0 %v193
    %254 = vmatpush.msra.mxu0 %v191
    %255 = vmatpush.msra.mxu0 %v189
    %256 = vmatpush.msra.mxu0 %v187
    %257 = vmatpush.msra.mxu0 %v185
    %258 = vmatpush.msra.mxu0 %v183
    %259 = vmatpush.msra.mxu0 %v181
    %260 = vmatpush.msra.mxu0 %v179
    %261 = vmatpush.msra.mxu0 %v177
    %262 = vmatpush.msra.mxu0 %v175
    %263 = vmatpush.msra.mxu0 %v173
    %264 = vmatpush.msra.mxu0 %v171
    %265 = vmatmul.f32.gmra.mxu0 %v106
    %v266 = vpop.f32.mrf.mxu0
    %v267 = vadd.f32 %v247, %v266
    %268 = vdwg.mxu0
    %269 = vmatpush.msra.mxu0 %v138
    %270 = vmatpush.msra.mxu0 %v136
    %271 = vmatpush.msra.mxu0 %v134
    %272 = vmatpush.msra.mxu0 %v132
    %273 = vmatpush.msra.mxu0 %v130
    %274 = vmatpush.msra.mxu0 %v128
    %275 = vmatpush.msra.mxu0 %v126
    %276 = vmatpush.msra.mxu0 %v124
    %277 = vmatpush.msra.mxu0 %v122
    %278 = vmatpush.msra.mxu0 %v120
    %279 = vmatpush.msra.mxu0 %v118
    %280 = vmatpush.msra.mxu0 %v116
    %281 = vmatpush.msra.mxu0 %v114
    %282 = vmatpush.msra.mxu0 %v112
    %283 = vmatpush.msra.mxu0 %v110
    %284 = vmatpush.msra.mxu0 %v108
    %285 = vmatmul.f32.gmra.mxu0 %v104
    %v286 = vpop.f32.mrf.mxu0
    %v287 = vadd.f32 %v206, %v286
    %288 = vdwg.mxu0
    %289 = vmatpush.msra.mxu0 %v170
    %290 = vmatpush.msra.mxu0 %v168
    %291 = vmatpush.msra.mxu0 %v166
    %292 = vmatpush.msra.mxu0 %v164
    %293 = vmatpush.msra.mxu0 %v162
    %294 = vmatpush.msra.mxu0 %v160
    %295 = vmatpush.msra.mxu0 %v158
    %296 = vmatpush.msra.mxu0 %v156
    %297 = vmatpush.msra.mxu0 %v154
    %298 = vmatpush.msra.mxu0 %v152
    %299 = vmatpush.msra.mxu0 %v150
    %300 = vmatpush.msra.mxu0 %v148
    %301 = vmatpush.msra.mxu0 %v146
    %302 = vmatpush.msra.mxu0 %v144
    %303 = vmatpush.msra.mxu0 %v142
    %304 = vmatpush.msra.mxu0 %v140
    %305 = vmatmul.f32.gmra.mxu0 %v105
    %v306 = vpop.f32.mrf.mxu0
    %v307 = vadd.f32 %v287, %v306
    %308 = vdwg.mxu0
    %309 = vmatpush.msra.mxu0 %v202
    %310 = vmatpush.msra.mxu0 %v200
    %311 = vmatpush.msra.mxu0 %v198
    %312 = vmatpush.msra.mxu0 %v196
    %313 = vmatpush.msra.mxu0 %v194
    %314 = vmatpush.msra.mxu0 %v192
    %315 = vmatpush.msra.mxu0 %v190
    %316 = vmatpush.msra.mxu0 %v188
    %317 = vmatpush.msra.mxu0 %v186
    %318 = vmatpush.msra.mxu0 %v184
    %319 = vmatpush.msra.mxu0 %v182
    %320 = vmatpush.msra.mxu0 %v180
    %321 = vmatpush.msra.mxu0 %v178
    %322 = vmatpush.msra.mxu0 %v176
    %323 = vmatpush.msra.mxu0 %v174
    %324 = vmatpush.msra.mxu0 %v172
    %325 = vmatmul.f32.gmra.mxu0 %v106
    %v326 = vpop.f32.mrf.mxu0
    %v327 = vadd.f32 %v307, %v326
    %328 = vdwg.mxu0
    %v329 = vmax.f32 %v267, 0.0
    %v330 = vmax.f32 %v327, 0.0
    %v331 = vld [vmem:[#allocation8] sm:$0xff]
    %v332 = vld [vmem:[#allocation8 + $0x8] sm:$0xff]
    %v333 = vld [vmem:[#allocation8 + $0x10] sm:$0xff]
    %v334 = vld [vmem:[#allocation8 + $0x18] sm:$0xff]
    %v335 = vld [vmem:[#allocation8 + $0x20] sm:$0xff]
    %v336 = vld [vmem:[#allocation8 + $0x28] sm:$0xff]
    %v337 = vld [vmem:[#allocation8 + $0x30] sm:$0xff]
    %v338 = vld [vmem:[#allocation8 + $0x38] sm:$0xff]
    %v339 = vld [vmem:[#allocation8 + $0x40] sm:$0xff]
    %v340 = vld [vmem:[#allocation8 + $0x48] sm:$0xff]
    %v341 = vld [vmem:[#allocation8 + $0x50] sm:$0xff]
    %v342 = vld [vmem:[#allocation8 + $0x58] sm:$0xff]
    %v343 = vld [vmem:[#allocation8 + $0x60] sm:$0xff]
    %v344 = vld [vmem:[#allocation8 + $0x68] sm:$0xff]
    %v345 = vld [vmem:[#allocation8 + $0x70] sm:$0xff]
    %v346 = vld [vmem:[#allocation8 + $0x78] sm:$0xff]
    %v347 = vld [vmem:[#allocation8 + $0x80] sm:$0xff]
    %v348 = vld [vmem:[#allocation8 + $0x88] sm:$0xff]
    %v349 = vld [vmem:[#allocation8 + $0x90] sm:$0xff]
    %v350 = vld [vmem:[#allocation8 + $0x98] sm:$0xff]
    %v351 = vld [vmem:[#allocation8 + $0xa0] sm:$0xff]
    %v352 = vld [vmem:[#allocation8 + $0xa8] sm:$0xff]
    %v353 = vld [vmem:[#allocation8 + $0xb0] sm:$0xff]
    %v354 = vld [vmem:[#allocation8 + $0xb8] sm:$0xff]
    %v355 = vld [vmem:[#allocation8 + $0xc0] sm:$0xff]
    %v356 = vld [vmem:[#allocation8 + $0xc8] sm:$0xff]
    %v357 = vld [vmem:[#allocation8 + $0xd0] sm:$0xff]
    %v358 = vld [vmem:[#allocation8 + $0xd8] sm:$0xff]
    %v359 = vld [vmem:[#allocation8 + $0xe0] sm:$0xff]
    %v360 = vld [vmem:[#allocation8 + $0xe8] sm:$0xff]
    %v361 = vld [vmem:[#allocation8 + $0xf0] sm:$0xff]
    %v362 = vld [vmem:[#allocation8 + $0xf8] sm:$0xff]
    %v363 = vld [vmem:[#allocation8 + $0x100] sm:$0xff]
    %v364 = vld [vmem:[#allocation8 + $0x108] sm:$0xff]
    %v365 = vld [vmem:[#allocation8 + $0x110] sm:$0xff]
    %v366 = vld [vmem:[#allocation8 + $0x118] sm:$0xff]
    %v367 = vld [vmem:[#allocation8 + $0x120] sm:$0xff]
    %v368 = vld [vmem:[#allocation8 + $0x128] sm:$0xff]
    %v369 = vld [vmem:[#allocation8 + $0x130] sm:$0xff]
    %v370 = vld [vmem:[#allocation8 + $0x138] sm:$0xff]
    %v371 = vld [vmem:[#allocation8 + $0x140] sm:$0xff]
    %v372 = vld [vmem:[#allocation8 + $0x148] sm:$0xff]
    %v373 = vld [vmem:[#allocation8 + $0x150] sm:$0xff]
    %v374 = vld [vmem:[#allocation8 + $0x158] sm:$0xff]
    %v375 = vld [vmem:[#allocation8 + $0x160] sm:$0xff]
    %v376 = vld [vmem:[#allocation8 + $0x168] sm:$0xff]
    %v377 = vld [vmem:[#allocation8 + $0x170] sm:$0xff]
    %v378 = vld [vmem:[#allocation8 + $0x178] sm:$0xff]
    %v379 = vld [vmem:[#allocation8 + $0x180] sm:$0xff]
    %v380 = vld [vmem:[#allocation8 + $0x188] sm:$0xff]
    %v381 = vld [vmem:[#allocation8 + $0x190] sm:$0xff]
    %v382 = vld [vmem:[#allocation8 + $0x198] sm:$0xff]
    %v383 = vld [vmem:[#allocation8 + $0x1a0] sm:$0xff]
    %v384 = vld [vmem:[#allocation8 + $0x1a8] sm:$0xff]
    %v385 = vld [vmem:[#allocation8 + $0x1b0] sm:$0xff]
    %v386 = vld [vmem:[#allocation8 + $0x1b8] sm:$0xff]
    %v387 = vld [vmem:[#allocation8 + $0x1c0] sm:$0xff]
    %v388 = vld [vmem:[#allocation8 + $0x1c8] sm:$0xff]
    %v389 = vld [vmem:[#allocation8 + $0x1d0] sm:$0xff]
    %v390 = vld [vmem:[#allocation8 + $0x1d8] sm:$0xff]
    %v391 = vld [vmem:[#allocation8 + $0x1e0] sm:$0xff]
    %v392 = vld [vmem:[#allocation8 + $0x1e8] sm:$0xff]
    %v393 = vld [vmem:[#allocation8 + $0x1f0] sm:$0xff]
    %v394 = vld [vmem:[#allocation8 + $0x1f8] sm:$0xff]
    %v395 = vld [vmem:[%s4] sm:$0x3]
    %v397 = vperm.slane %v395, 0
    %v398 = vperm.slane %v395, 1
    %401 = vmatpush.msra.mxu0 %v361
    %402 = vmatpush.msra.mxu0 %v359
    %403 = vmatpush.msra.mxu0 %v357
    %404 = vmatpush.msra.mxu0 %v355
    %405 = vmatpush.msra.mxu0 %v353
    %406 = vmatpush.msra.mxu0 %v351
    %407 = vmatpush.msra.mxu0 %v349
    %408 = vmatpush.msra.mxu0 %v347
    %409 = vmatpush.msra.mxu0 %v345
    %410 = vmatpush.msra.mxu0 %v343
    %411 = vmatpush.msra.mxu0 %v341
    %412 = vmatpush.msra.mxu0 %v339
    %413 = vmatpush.msra.mxu0 %v337
    %414 = vmatpush.msra.mxu0 %v335
    %415 = vmatpush.msra.mxu0 %v333
    %416 = vmatpush.msra.mxu0 %v331
    %417 = vmatmul.f32.gmra.mxu0 %v329
    %v418 = vpop.f32.mrf.mxu0
    %v419 = vadd.f32 %v397, %v418
    %420 = vdwg.mxu0
    %421 = vmatpush.msra.mxu0 %v393
    %422 = vmatpush.msra.mxu0 %v391
    %423 = vmatpush.msra.mxu0 %v389
    %424 = vmatpush.msra.mxu0 %v387
    %425 = vmatpush.msra.mxu0 %v385
    %426 = vmatpush.msra.mxu0 %v383
    %427 = vmatpush.msra.mxu0 %v381
    %428 = vmatpush.msra.mxu0 %v379
    %429 = vmatpush.msra.mxu0 %v377
    %430 = vmatpush.msra.mxu0 %v375
    %431 = vmatpush.msra.mxu0 %v373
    %432 = vmatpush.msra.mxu0 %v371
    %433 = vmatpush.msra.mxu0 %v369
    %434 = vmatpush.msra.mxu0 %v367
    %435 = vmatpush.msra.mxu0 %v365
    %436 = vmatpush.msra.mxu0 %v363
    %437 = vmatmul.f32.gmra.mxu0 %v330
    %v438 = vpop.f32.mrf.mxu0
    %v439 = vadd.f32 %v419, %v438
    %440 = vdwg.mxu0
    %441 = vmatpush.msra.mxu0 %v362
    %442 = vmatpush.msra.mxu0 %v360
    %443 = vmatpush.msra.mxu0 %v358
    %444 = vmatpush.msra.mxu0 %v356
    %445 = vmatpush.msra.mxu0 %v354
    %446 = vmatpush.msra.mxu0 %v352
    %447 = vmatpush.msra.mxu0 %v350
    %448 = vmatpush.msra.mxu0 %v348
    %449 = vmatpush.msra.mxu0 %v346
    %450 = vmatpush.msra.mxu0 %v344
    %451 = vmatpush.msra.mxu0 %v342
    %452 = vmatpush.msra.mxu0 %v340
    %453 = vmatpush.msra.mxu0 %v338
    %454 = vmatpush.msra.mxu0 %v336
    %455 = vmatpush.msra.mxu0 %v334
    %456 = vmatpush.msra.mxu0 %v332
    %457 = vmatmul.f32.gmra.mxu0 %v329
    %v458 = vpop.f32.mrf.mxu0
    %v459 = vadd.f32 %v398, %v458
    %460 = vdwg.mxu0
    %461 = vmatpush.msra.mxu0 %v394
    %462 = vmatpush.msra.mxu0 %v392
    %463 = vmatpush.msra.mxu0 %v390
    %464 = vmatpush.msra.mxu0 %v388
    %465 = vmatpush.msra.mxu0 %v386
    %466 = vmatpush.msra.mxu0 %v384
    %467 = vmatpush.msra.mxu0 %v382
    %468 = vmatpush.msra.mxu0 %v380
    %469 = vmatpush.msra.mxu0 %v378
    %470 = vmatpush.msra.mxu0 %v376
    %471 = vmatpush.msra.mxu0 %v374
    %472 = vmatpush.msra.mxu0 %v372
    %473 = vmatpush.msra.mxu0 %v370
    %474 = vmatpush.msra.mxu0 %v368
    %475 = vmatpush.msra.mxu0 %v366
    %476 = vmatpush.msra.mxu0 %v364
    %477 = vmatmul.f32.gmra.mxu0 %v330
    %v478 = vpop.f32.mrf.mxu0
    %v479 = vadd.f32 %v459, %v478
    %480 = vdwg.mxu0
    %v481 = vmax.f32 %v439, 0.0
    %v482 = vmax.f32 %v479, 0.0
    %v483 = vld [vmem:[#allocation10] sm:$0xff]
    %v484 = vld [vmem:[#allocation10 + $0x8] sm:$0xff]
    %v485 = vld [vmem:[#allocation10 + $0x10] sm:$0xff]
    %v486 = vld [vmem:[#allocation10 + $0x18] sm:$0xff]
    %v487 = vld [vmem:[#allocation10 + $0x20] sm:$0xff]
    %v488 = vld [vmem:[#allocation10 + $0x28] sm:$0xff]
    %v489 = vld [vmem:[#allocation10 + $0x30] sm:$0xff]
    %v490 = vld [vmem:[#allocation10 + $0x38] sm:$0xff]
    %v491 = vld [vmem:[#allocation10 + $0x40] sm:$0xff]
    %v492 = vld [vmem:[#allocation10 + $0x48] sm:$0xff]
    %v493 = vld [vmem:[#allocation10 + $0x50] sm:$0xff]
    %v494 = vld [vmem:[#allocation10 + $0x58] sm:$0xff]
    %v495 = vld [vmem:[#allocation10 + $0x60] sm:$0xff]
    %v496 = vld [vmem:[#allocation10 + $0x68] sm:$0xff]
    %v497 = vld [vmem:[#allocation10 + $0x70] sm:$0xff]
    %v498 = vld [vmem:[#allocation10 + $0x78] sm:$0xff]
    %v499 = vld [vmem:[#allocation10 + $0x80] sm:$0xff]
    %v500 = vld [vmem:[#allocation10 + $0x88] sm:$0xff]
    %v501 = vld [vmem:[#allocation10 + $0x90] sm:$0xff]
    %v502 = vld [vmem:[#allocation10 + $0x98] sm:$0xff]
    %v503 = vld [vmem:[#allocation10 + $0xa0] sm:$0xff]
    %v504 = vld [vmem:[#allocation10 + $0xa8] sm:$0xff]
    %v505 = vld [vmem:[#allocation10 + $0xb0] sm:$0xff]
    %v506 = vld [vmem:[#allocation10 + $0xb8] sm:$0xff]
    %v507 = vld [vmem:[#allocation10 + $0xc0] sm:$0xff]
    %v508 = vld [vmem:[#allocation10 + $0xc8] sm:$0xff]
    %v509 = vld [vmem:[#allocation10 + $0xd0] sm:$0xff]
    %v510 = vld [vmem:[#allocation10 + $0xd8] sm:$0xff]
    %v511 = vld [vmem:[#allocation10 + $0xe0] sm:$0xff]
    %v512 = vld [vmem:[#allocation10 + $0xe8] sm:$0xff]
    %v513 = vld [vmem:[#allocation10 + $0xf0] sm:$0xff]
    %v514 = vld [vmem:[#allocation10 + $0xf8] sm:$0xff]
    %v515 = vld [vmem:[#allocation10 + $0x100] sm:$0xff]
    %v516 = vld [vmem:[#allocation10 + $0x108] sm:$0xff]
    %v517 = vld [vmem:[#allocation10 + $0x110] sm:$0xff]
    %v518 = vld [vmem:[#allocation10 + $0x118] sm:$0xff]
    %v519 = vld [vmem:[#allocation10 + $0x120] sm:$0xff]
    %v520 = vld [vmem:[#allocation10 + $0x128] sm:$0xff]
    %v521 = vld [vmem:[#allocation10 + $0x130] sm:$0xff]
    %v522 = vld [vmem:[#allocation10 + $0x138] sm:$0xff]
    %v523 = vld [vmem:[#allocation10 + $0x140] sm:$0xff]
    %v524 = vld [vmem:[#allocation10 + $0x148] sm:$0xff]
    %v525 = vld [vmem:[#allocation10 + $0x150] sm:$0xff]
    %v526 = vld [vmem:[#allocation10 + $0x158] sm:$0xff]
    %v527 = vld [vmem:[#allocation10 + $0x160] sm:$0xff]
    %v528 = vld [vmem:[#allocation10 + $0x168] sm:$0xff]
    %v529 = vld [vmem:[#allocation10 + $0x170] sm:$0xff]
    %v530 = vld [vmem:[#allocation10 + $0x178] sm:$0xff]
    %v531 = vld [vmem:[#allocation10 + $0x180] sm:$0xff]
    %v532 = vld [vmem:[#allocation10 + $0x188] sm:$0xff]
    %v533 = vld [vmem:[#allocation10 + $0x190] sm:$0xff]
    %v534 = vld [vmem:[#allocation10 + $0x198] sm:$0xff]
    %v535 = vld [vmem:[#allocation10 + $0x1a0] sm:$0xff]
    %v536 = vld [vmem:[#allocation10 + $0x1a8] sm:$0xff]
    %v537 = vld [vmem:[#allocation10 + $0x1b0] sm:$0xff]
    %v538 = vld [vmem:[#allocation10 + $0x1b8] sm:$0xff]
    %v539 = vld [vmem:[#allocation10 + $0x1c0] sm:$0xff]
    %v540 = vld [vmem:[#allocation10 + $0x1c8] sm:$0xff]
    %v541 = vld [vmem:[#allocation10 + $0x1d0] sm:$0xff]
    %v542 = vld [vmem:[#allocation10 + $0x1d8] sm:$0xff]
    %v543 = vld [vmem:[#allocation10 + $0x1e0] sm:$0xff]
    %v544 = vld [vmem:[#allocation10 + $0x1e8] sm:$0xff]
    %v545 = vld [vmem:[#allocation10 + $0x1f0] sm:$0xff]
    %v546 = vld [vmem:[#allocation10 + $0x1f8] sm:$0xff]
    %v547 = vld [vmem:[%s6] sm:$0x3]
    %v549 = vperm.slane %v547, 0
    %v550 = vperm.slane %v547, 1
    %553 = vmatpush.msra.mxu0 %v513
    %554 = vmatpush.msra.mxu0 %v511
    %555 = vmatpush.msra.mxu0 %v509
    %556 = vmatpush.msra.mxu0 %v507
    %557 = vmatpush.msra.mxu0 %v505
    %558 = vmatpush.msra.mxu0 %v503
    %559 = vmatpush.msra.mxu0 %v501
    %560 = vmatpush.msra.mxu0 %v499
    %561 = vmatpush.msra.mxu0 %v497
    %562 = vmatpush.msra.mxu0 %v495
    %563 = vmatpush.msra.mxu0 %v493
    %564 = vmatpush.msra.mxu0 %v491
    %565 = vmatpush.msra.mxu0 %v489
    %566 = vmatpush.msra.mxu0 %v487
    %567 = vmatpush.msra.mxu0 %v485
    %568 = vmatpush.msra.mxu0 %v483
    %569 = vmatmul.f32.gmra.mxu0 %v481
    %v570 = vpop.f32.mrf.mxu0
    %v571 = vadd.f32 %v549, %v570
    %572 = vdwg.mxu0
    %573 = vmatpush.msra.mxu0 %v545
    %574 = vmatpush.msra.mxu0 %v543
    %575 = vmatpush.msra.mxu0 %v541
    %576 = vmatpush.msra.mxu0 %v539
    %577 = vmatpush.msra.mxu0 %v537
    %578 = vmatpush.msra.mxu0 %v535
    %579 = vmatpush.msra.mxu0 %v533
    %580 = vmatpush.msra.mxu0 %v531
    %581 = vmatpush.msra.mxu0 %v529
    %582 = vmatpush.msra.mxu0 %v527
    %583 = vmatpush.msra.mxu0 %v525
    %584 = vmatpush.msra.mxu0 %v523
    %585 = vmatpush.msra.mxu0 %v521
    %586 = vmatpush.msra.mxu0 %v519
    %587 = vmatpush.msra.mxu0 %v517
    %588 = vmatpush.msra.mxu0 %v515
    %589 = vmatmul.f32.gmra.mxu0 %v482
    %v590 = vpop.f32.mrf.mxu0
    %v591 = vadd.f32 %v571, %v590
    %592 = vdwg.mxu0
    %593 = vmatpush.msra.mxu0 %v514
    %594 = vmatpush.msra.mxu0 %v512
    %595 = vmatpush.msra.mxu0 %v510
    %596 = vmatpush.msra.mxu0 %v508
    %597 = vmatpush.msra.mxu0 %v506
    %598 = vmatpush.msra.mxu0 %v504
    %599 = vmatpush.msra.mxu0 %v502
    %600 = vmatpush.msra.mxu0 %v500
    %601 = vmatpush.msra.mxu0 %v498
    %602 = vmatpush.msra.mxu0 %v496
    %603 = vmatpush.msra.mxu0 %v494
    %604 = vmatpush.msra.mxu0 %v492
    %605 = vmatpush.msra.mxu0 %v490
    %606 = vmatpush.msra.mxu0 %v488
    %607 = vmatpush.msra.mxu0 %v486
    %608 = vmatpush.msra.mxu0 %v484
    %609 = vmatmul.f32.gmra.mxu0 %v481
    %v610 = vpop.f32.mrf.mxu0
    %v611 = vadd.f32 %v550, %v610
    %612 = vdwg.mxu0
    %613 = vmatpush.msra.mxu0 %v546
    %614 = vmatpush.msra.mxu0 %v544
    %615 = vmatpush.msra.mxu0 %v542
    %616 = vmatpush.msra.mxu0 %v540
    %617 = vmatpush.msra.mxu0 %v538
    %618 = vmatpush.msra.mxu0 %v536
    %619 = vmatpush.msra.mxu0 %v534
    %620 = vmatpush.msra.mxu0 %v532
    %621 = vmatpush.msra.mxu0 %v530
    %622 = vmatpush.msra.mxu0 %v528
    %623 = vmatpush.msra.mxu0 %v526
    %624 = vmatpush.msra.mxu0 %v524
    %625 = vmatpush.msra.mxu0 %v522
    %626 = vmatpush.msra.mxu0 %v520
    %627 = vmatpush.msra.mxu0 %v518
    %628 = vmatpush.msra.mxu0 %v516
    %629 = vmatmul.f32.gmra.mxu0 %v482
    %v630 = vpop.f32.mrf.mxu0
    %v631 = vadd.f32 %v611, %v630
    %632 = vdwg.mxu0
    %v633 = vtanh.pop %v591
    %634 = vst [vmem:[#allocation11] sm:$0xff] %v633
    %v635 = vmax.f32 %v631, -20.0
    %v636 = vmin.f32 %v635, 2.0
    %v637 = vmul.f32 %v636, 1.442695
    %v638 = vpow.pop %v637
    %639 = vst [vmem:[#allocation12] sm:$0xff] %v638
    // Predicated region
    $region50: #{tpu_custom_call.1} parent=1 // pred_check
      _
    $region51: #{tpu_custom_call.1} parent=1 // pred_check_branch
      %641 = sbr.rel (0) target = $region53
    $region52: #{tpu_custom_call.1} parent=1 // pred_region
      %643 = vsyncadd [#allocation4], 0
      %s645 = sshll.u32 [#allocation11], 4
      %s646 = int_to_ptr.vmem [resolvable:$true] %s645
      %s647 = sshll.u32 %s7, 4
      %s648 = int_to_ptr.hbm [resolvable:$true] %s647
      %650 = dma.vmem_to_hbm [thread:$0]  %s646, 128, %s648, [#allocation4]
    $region53: #{tpu_custom_call.1} parent=1 // pred_fallthru
      _
    // Predicated region
    $region54: #{tpu_custom_call.1} parent=1 // pred_check
      _
    $region55: #{tpu_custom_call.1} parent=1 // pred_check_branch
      %652 = sbr.rel (0) target = $region57
    $region56: #{tpu_custom_call.1} parent=1 // pred_region
      %654 = vsyncadd [#allocation13], 0
      %s656 = sshll.u32 [#allocation12], 4
      %s657 = int_to_ptr.vmem [resolvable:$true] %s656
      %s658 = sshll.u32 %s8, 4
      %s659 = int_to_ptr.hbm [resolvable:$true] %s658
      %661 = dma.vmem_to_hbm [thread:$0]  %s657, 128, %s659, [#allocation13]
    $region57: #{tpu_custom_call.1} parent=1 // pred_fallthru
      _
    // Predicated region
    $region58: #{tpu_custom_call.1} parent=1 // pred_check
      _
    $region59: #{tpu_custom_call.1} parent=1 // pred_check_branch
      %663 = sbr.rel (0) target = $region61
    $region60: #{tpu_custom_call.1} parent=1 // pred_region
      %665 = dma.done [#allocation4], 128
    $region61: #{tpu_custom_call.1} parent=1 // pred_fallthru
      _
    // Predicated region
    $region62: #{tpu_custom_call.1} parent=1 // pred_check
      _
    $region63: #{tpu_custom_call.1} parent=1 // pred_check_branch
      %667 = sbr.rel (0) target = $region65
    $region64: #{tpu_custom_call.1} parent=1 // pred_region
      %669 = dma.done [#allocation13], 128
    $region65: #{tpu_custom_call.1} parent=1 // pred_fallthru
      _
    %670 = vsyncpa [#allocation3], 1
    %671 = vsyncpa [#allocation6], 1
    %672 = vsyncpa [#allocation9], 1
    %673 = vsyncpa [#allocation4], 1
    %674 = vsyncpa [#allocation13], 1

</llo_original>
